<compile_context>
chip_gen: v6e
topology: v6e:2x2x1
jax: 0.10.0
libtpu: 0.0.40
codegen_flags: <defaults>
</compile_context>

<pallas_src>
import functools

import jax
import jax.numpy as jnp
from jax.experimental import pallas as pl
from jax.experimental.pallas import tpu as pltpu


def _round_up(n, m):
    return ((n + m - 1) // m) * m


def dueling_dqn_kernel(x_ref, w0_ref, w_ref, b_ref, q_ref, *, action_size):
    x = x_ref[...]                                                     # (TB, Ds) narrow stream

    # feature layers: Linear -> ReLU -> (Dropout=id) -> Linear -> ReLU -> (Dropout=id)
    h = jnp.dot(x, w0_ref[...], preferred_element_type=jnp.float32) + b_ref[0:1, :]
    h = jnp.maximum(h, 0.0)
    h = jnp.dot(h, w_ref[0], preferred_element_type=jnp.float32) + b_ref[1:2, :]
    h = jnp.maximum(h, 0.0)

    # fused value||advantage stream, layer 1: one matmul produces [vh | ah]
    s = jnp.dot(h, w_ref[1], preferred_element_type=jnp.float32) + b_ref[2:3, :]
    s = jnp.maximum(s, 0.0)

    # fused layer 2 (block-diagonal weights): cols 0..A-1 = advantage, col A = value
    o = jnp.dot(s, w_ref[2], preferred_element_type=jnp.float32) + b_ref[3:4, :]

    a_sum = jnp.sum(o[:, 0:action_size], axis=1, keepdims=True)       # real A cols only
    v = o[:, action_size:action_size + 1]                             # (TB, 1)

    # Q(s,a) = V(s) + A(s,a) - mean_a A(s,a); computed across the full 128-lane slab
    # (cols >= action_size hold garbage and are sliced off in the wrapper) so the
    # store is a full-width unmasked vst.
    q_ref[...] = v + o - a_sum * (1.0 / action_size)


def pack_params(params, state_size, action_size):
    """Pack weights/biases into lane-aligned, VMEM-resident blobs."""
    h1 = params["w1"].shape[1]
    h2 = params["w2"].shape[1]
    half = params["wv1"].shape[1]
    Ds = _round_up(state_size, 8)
    Dp = _round_up(max(h1, h2, 2 * half, action_size + 1), 128)

    W0 = jnp.zeros((Ds, Dp), jnp.float32)
    W0 = W0.at[:state_size, :h1].set(params["w1"])

    W = jnp.zeros((3, Dp, Dp), jnp.float32)
    W = W.at[0, :h1, :h2].set(params["w2"])
    # fused stream layer 1: [wv1 | wa1]
    W = W.at[1, :h2, :half].set(params["wv1"])
    W = W.at[1, :h2, half:2 * half].set(params["wa1"])
    # fused stream layer 2: advantage at lanes 0..A-1 (lane-0 aligned), value at lane A
    W = W.at[2, half:2 * half, 0:action_size].set(params["wa2"])
    W = W.at[2, :half, action_size:action_size + 1].set(params["wv2"])

    Bias = jnp.zeros((8, Dp), jnp.float32)
    Bias = Bias.at[0, :h1].set(params["b1"].reshape(-1))
    Bias = Bias.at[1, :h2].set(params["b2"].reshape(-1))
    Bias = Bias.at[2, :half].set(params["bv1"].reshape(-1))
    Bias = Bias.at[2, half:2 * half].set(params["ba1"].reshape(-1))
    Bias = Bias.at[3, 0:action_size].set(params["ba2"].reshape(-1))
    Bias = Bias.at[3, action_size:action_size + 1].set(params["bv2"].reshape(-1))
    return W0, W, Bias, Ds, Dp


def dueling_dqn_forward(x, params):
    """x: [B, state_size] float32; params: dict of weights/biases (biases shaped (1, out))."""
    x = x.astype(jnp.float32)
    B, state_size = x.shape
    action_size = params["wa2"].shape[1]

    W0, W, Bias, Ds, Dp = pack_params(params, state_size, action_size)

    # Batch tiling: per-grid-step overhead dominates this tiny network, so use one
    # big step for small/medium batches; 1024-row tiles beyond that (>= 2 parallel
    # grid steps -> both v7x TensorCores busy). VMEM at TB=1024 is ~2 MiB.
    if B <= 1024:
        TB = _round_up(max(B, 8), 8)
    else:
        TB = 1024
    B_pad = _round_up(B, TB)

    # Pad only what is needed: batch to a TB multiple, features to a sublane multiple.
    # No 128-lane feature padding of the streamed input, and no copy at all when
    # shapes already divide.
    if B_pad != B or Ds != state_size:
        x_in = jnp.pad(x, ((0, B_pad - B), (0, Ds - state_size)))
    else:
        x_in = x

    kernel = functools.partial(dueling_dqn_kernel, action_size=action_size)
    q_pad = pl.pallas_call(
        kernel,
        out_shape=jax.ShapeDtypeStruct((B_pad, Dp), jnp.float32),
        grid=(B_pad // TB,),
        in_specs=[
            pl.BlockSpec((TB, Ds), lambda i: (i, 0)),         # x: streamed per batch tile
            pl.BlockSpec((Ds, Dp), lambda i: (0, 0)),         # layer-1 weight: VMEM-resident
            pl.BlockSpec((3, Dp, Dp), lambda i: (0, 0, 0)),   # packed weights: VMEM-resident
            pl.BlockSpec((8, Dp), lambda i: (0, 0)),          # packed biases: VMEM-resident
        ],
        out_specs=pl.BlockSpec((TB, Dp), lambda i: (i, 0)),   # lane-dense output slab
        compiler_params=pltpu.CompilerParams(
            dimension_semantics=("parallel",),
        ),
    )(x_in, W0, W, Bias)
    return q_pad[:B, :action_size]


def xavier_uniform(key, fan_in, fan_out):
    # matches torch.nn.init.xavier_uniform_ (gain=1)
    limit = (6.0 / (fan_in + fan_out)) ** 0.5
    return jax.random.uniform(
        key, (fan_in, fan_out), dtype=jnp.float32, minval=-limit, maxval=limit
    )


def init_params(key, state_size, action_size, hidden_units=(64, 64)):
    h1, h2 = hidden_units
    half = h2 // 2
    keys = jax.random.split(key, 6)
    return {
        "w1": xavier_uniform(keys[0], state_size, h1),
        "b1": jnp.zeros((1, h1), jnp.float32),
        "w2": xavier_uniform(keys[1], h1, h2),
        "b2": jnp.zeros((1, h2), jnp.float32),
        "wv1": xavier_uniform(keys[2], h2, half),
        "bv1": jnp.zeros((1, half), jnp.float32),
        "wv2": xavier_uniform(keys[3], half, 1),
        "bv2": jnp.zeros((1, 1), jnp.float32),
        "wa1": xavier_uniform(keys[4], h2, half),
        "ba1": jnp.zeros((1, half), jnp.float32),
        "wa2": xavier_uniform(keys[5], half, action_size),
        "ba2": jnp.zeros((1, action_size), jnp.float32),
    }


def reference_forward(x, p):
    relu = lambda t: jnp.maximum(t, 0.0)
    h = relu(x @ p["w1"] + p["b1"])
    h = relu(h @ p["w2"] + p["b2"])
    v = relu(h @ p["wv1"] + p["bv1"]) @ p["wv2"] + p["bv2"]
    a = relu(h @ p["wa1"] + p["ba1"]) @ p["wa2"] + p["ba2"]
    return v + a - jnp.mean(a, axis=1, keepdims=True)


if __name__ == "__main__":
    key = jax.random.PRNGKey(0)
    k_param, k_x = jax.random.split(key)

    batch = 8
    state_size = 16
    action_size = 4

    params = init_params(k_param, state_size, action_size, hidden_units=(64, 64))
    x = jax.random.normal(k_x, (batch, state_size), dtype=jnp.float32)

    q = dueling_dqn_forward(x, params)
    q = jax.block_until_ready(q)

    q_ref = reference_forward(x, params)
    assert q.shape == (batch, action_size)
    assert jnp.allclose(q, q_ref, atol=1e-5, rtol=1e-5), float(jnp.max(jnp.abs(q - q_ref)))

    print("KERNEL_OK")
</pallas_src>

<mosaic_0001>
module attributes {stable_mosaic.version = 11 : i64} {
  func.func @dueling_dqn_kernel(%arg0: i32, %arg1: memref<8x16xf32, #tpu.memory_space<vmem>>, %arg2: memref<16x128xf32, #tpu.memory_space<vmem>>, %arg3: memref<3x128x128xf32, #tpu.memory_space<vmem>>, %arg4: memref<8x128xf32, #tpu.memory_space<vmem>>, %arg5: memref<8x128xf32, #tpu.memory_space<vmem>>) attributes {dimension_semantics = [#tpu.dimension_semantics<parallel>], iteration_bounds = array<i64: 1>, scalar_prefetch = 0 : i64, scratch_operands = 0 : i64, tpu.core_type = #tpu.core_type<tc>, window_params = [{transform_indices = @transform_0, window_bounds = array<i64: 8, 16>}, {pipeline_mode = #tpu.pipeline_mode<synchronous>, transform_indices = @transform_1, window_bounds = array<i64: 16, 128>}, {pipeline_mode = #tpu.pipeline_mode<synchronous>, transform_indices = @transform_2, window_bounds = array<i64: 3, 128, 128>}, {pipeline_mode = #tpu.pipeline_mode<synchronous>, transform_indices = @transform_3, window_bounds = array<i64: 8, 128>}, {transform_indices = @transform_4, window_bounds = array<i64: 8, 128>}]} {
    %c0 = arith.constant 0 : index
    %c0_0 = arith.constant 0 : index
    %0 = vector.load %arg1[%c0, %c0_0] : memref<8x16xf32, #tpu.memory_space<vmem>>, vector<8x16xf32>
    %c0_1 = arith.constant 0 : index
    %c0_2 = arith.constant 0 : index
    %1 = vector.load %arg2[%c0_1, %c0_2] : memref<16x128xf32, #tpu.memory_space<vmem>>, vector<16x128xf32>
    %cst = arith.constant dense<0.000000e+00> : vector<8x128xf32>
    %2 = tpu.matmul %0, %1, %cst {dimension_numbers = #tpu.dot_dimension_numbers<[1], [0], [0], [1], [0, 0, 1, 1], [], []>} : vector<8x16xf32>, vector<16x128xf32>, vector<8x128xf32> -> vector<8x128xf32>
    %c0_3 = arith.constant 0 : index
    %c0_4 = arith.constant 0 : index
    %3 = vector.load %arg4[%c0_3, %c0_4] : memref<8x128xf32, #tpu.memory_space<vmem>>, vector<1x128xf32>
    %4 = vector.broadcast %3 : vector<1x128xf32> to vector<8x128xf32>
    %5 = arith.addf %2, %4 : vector<8x128xf32>
    %cst_5 = arith.constant 0.000000e+00 : f32
    %6 = vector.broadcast %cst_5 : f32 to vector<8x128xf32>
    %7 = arith.maximumf %5, %6 : vector<8x128xf32>
    %c0_6 = arith.constant 0 : index
    %c0_7 = arith.constant 0 : index
    %c0_8 = arith.constant 0 : index
    %8 = vector.load %arg3[%c0_6, %c0_7, %c0_8] : memref<3x128x128xf32, #tpu.memory_space<vmem>>, vector<1x128x128xf32>
    %9 = vector.shape_cast %8 : vector<1x128x128xf32> to vector<128x128xf32>
    %cst_9 = arith.constant dense<0.000000e+00> : vector<8x128xf32>
    %10 = tpu.matmul %7, %9, %cst_9 {dimension_numbers = #tpu.dot_dimension_numbers<[1], [0], [0], [1], [0, 0, 1, 1], [], []>} : vector<8x128xf32>, vector<128x128xf32>, vector<8x128xf32> -> vector<8x128xf32>
    %c1 = arith.constant 1 : index
    %c0_10 = arith.constant 0 : index
    %11 = vector.load %arg4[%c1, %c0_10] : memref<8x128xf32, #tpu.memory_space<vmem>>, vector<1x128xf32>
    %12 = vector.broadcast %11 : vector<1x128xf32> to vector<8x128xf32>
    %13 = arith.addf %10, %12 : vector<8x128xf32>
    %cst_11 = arith.constant 0.000000e+00 : f32
    %14 = vector.broadcast %cst_11 : f32 to vector<8x128xf32>
    %15 = arith.maximumf %13, %14 : vector<8x128xf32>
    %c1_12 = arith.constant 1 : index
    %c0_13 = arith.constant 0 : index
    %c0_14 = arith.constant 0 : index
    %16 = vector.load %arg3[%c1_12, %c0_13, %c0_14] : memref<3x128x128xf32, #tpu.memory_space<vmem>>, vector<1x128x128xf32>
    %17 = vector.shape_cast %16 : vector<1x128x128xf32> to vector<128x128xf32>
    %cst_15 = arith.constant dense<0.000000e+00> : vector<8x128xf32>
    %18 = tpu.matmul %15, %17, %cst_15 {dimension_numbers = #tpu.dot_dimension_numbers<[1], [0], [0], [1], [0, 0, 1, 1], [], []>} : vector<8x128xf32>, vector<128x128xf32>, vector<8x128xf32> -> vector<8x128xf32>
    %c2 = arith.constant 2 : index
    %c0_16 = arith.constant 0 : index
    %19 = vector.load %arg4[%c2, %c0_16] : memref<8x128xf32, #tpu.memory_space<vmem>>, vector<1x128xf32>
    %20 = vector.broadcast %19 : vector<1x128xf32> to vector<8x128xf32>
    %21 = arith.addf %18, %20 : vector<8x128xf32>
    %cst_17 = arith.constant 0.000000e+00 : f32
    %22 = vector.broadcast %cst_17 : f32 to vector<8x128xf32>
    %23 = arith.maximumf %21, %22 : vector<8x128xf32>
    %c2_18 = arith.constant 2 : index
    %c0_19 = arith.constant 0 : index
    %c0_20 = arith.constant 0 : index
    %24 = vector.load %arg3[%c2_18, %c0_19, %c0_20] : memref<3x128x128xf32, #tpu.memory_space<vmem>>, vector<1x128x128xf32>
    %25 = vector.shape_cast %24 : vector<1x128x128xf32> to vector<128x128xf32>
    %cst_21 = arith.constant dense<0.000000e+00> : vector<8x128xf32>
    %26 = tpu.matmul %23, %25, %cst_21 {dimension_numbers = #tpu.dot_dimension_numbers<[1], [0], [0], [1], [0, 0, 1, 1], [], []>} : vector<8x128xf32>, vector<128x128xf32>, vector<8x128xf32> -> vector<8x128xf32>
    %c3 = arith.constant 3 : index
    %c0_22 = arith.constant 0 : index
    %27 = vector.load %arg4[%c3, %c0_22] : memref<8x128xf32, #tpu.memory_space<vmem>>, vector<1x128xf32>
    %28 = vector.broadcast %27 : vector<1x128xf32> to vector<8x128xf32>
    %29 = arith.addf %26, %28 : vector<8x128xf32>
    %30 = vector.extract_strided_slice %29 {offsets = [0, 0], sizes = [8, 4], strides = [1, 1]} : vector<8x128xf32> to vector<8x4xf32>
    %cst_23 = arith.constant dense<0.000000e+00> : vector<8xf32>
    %31 = vector.multi_reduction <add>, %30, %cst_23 [1] : vector<8x4xf32> to vector<8xf32>
    %32 = vector.shape_cast %31 : vector<8xf32> to vector<8x1xf32>
    %33 = vector.extract_strided_slice %29 {offsets = [0, 4], sizes = [8, 1], strides = [1, 1]} : vector<8x128xf32> to vector<8x1xf32>
    %34 = vector.broadcast %33 : vector<8x1xf32> to vector<8x128xf32>
    %35 = arith.addf %34, %29 : vector<8x128xf32>
    %cst_24 = arith.constant 2.500000e-01 : f32
    %36 = vector.broadcast %cst_24 : f32 to vector<8x1xf32>
    %37 = arith.mulf %32, %36 : vector<8x1xf32>
    %38 = vector.broadcast %37 : vector<8x1xf32> to vector<8x128xf32>
    %39 = arith.subf %35, %38 : vector<8x128xf32>
    %c0_25 = arith.constant 0 : index
    %c0_26 = arith.constant 0 : index
    %40 = vector.load %arg5[%c0_25, %c0_26] : memref<8x128xf32, #tpu.memory_space<vmem>>, vector<8x128xf32>
    tpu.vector_store %arg5[%c0_25, %c0_26], %39 {strides = array<i32>} : memref<8x128xf32, #tpu.memory_space<vmem>>, vector<8x128xf32>,
    return
  }
  func.func @transform_0(%arg0: i32) -> (i32, i32) {
    %c0_i32 = arith.constant 0 : i32
    %c0_i32_0 = arith.constant 0 : i32
    return %arg0, %c0_i32 : i32, i32
  }
  func.func @transform_1(%arg0: i32) -> (i32, i32) {
    %c0_i32 = arith.constant 0 : i32
    %c0_i32_0 = arith.constant 0 : i32
    %c0_i32_1 = arith.constant 0 : i32
    return %c0_i32, %c0_i32_0 : i32, i32
  }
  func.func @transform_2(%arg0: i32) -> (i32, i32, i32) {
    %c0_i32 = arith.constant 0 : i32
    %c0_i32_0 = arith.constant 0 : i32
    %c0_i32_1 = arith.constant 0 : i32
    %c0_i32_2 = arith.constant 0 : i32
    return %c0_i32, %c0_i32_0, %c0_i32_1 : i32, i32, i32
  }
  func.func @transform_3(%arg0: i32) -> (i32, i32) {
    %c0_i32 = arith.constant 0 : i32
    %c0_i32_0 = arith.constant 0 : i32
    %c0_i32_1 = arith.constant 0 : i32
    return %c0_i32, %c0_i32_0 : i32, i32
  }
  func.func @transform_4(%arg0: i32) -> (i32, i32) {
    %c0_i32 = arith.constant 0 : i32
    %c0_i32_0 = arith.constant 0 : i32
    return %arg0, %c0_i32 : i32, i32
  }
}

</mosaic_0001>

<llo_original>
// kernel: tpu_custom_call.1
$region0: #{tpu_custom_call.1}
  #allocation0 [shape = 'u32[]', space=smem, size = 0x4, offset = 0x4, fixed_abs, tag = 'smem constant byte address 0x4 - core index']
  #allocation1 [shape = 'u32[144,128]{1,0:T(1,128)}', space=vmem, size = 0x12000, scoped, tag = 'internal scratch']
  %s0 = inlined_call_operand.hbm [shape: f32[8,16], index: 0, kind: input, shape index: {}]
  %s1 = inlined_call_operand.hbm [shape: f32[16,128], index: 1, kind: input, shape index: {}]
  %s2 = inlined_call_operand.hbm [shape: f32[3,128,128], index: 2, kind: input, shape index: {}]
  %s3 = inlined_call_operand.hbm [shape: f32[8,128], index: 3, kind: input, shape index: {}]
  %s4 = inlined_call_operand.hbm [shape: f32[8,128], index: 4, kind: output, shape index: {}]
  %s5 = sld [smem:[#allocation0]]
  $region42: #{tpu_custom_call.1} parent=0
    _
  %s7 = ssub.s32 1, %s5
  %s8 = scalar_select 0, %s7, %s5
  $region1: #{tpu_custom_call.1} parent=0
    #allocation2 [shape = 'u8[4096]{0}', space=vmem, size = 0x1000, scoped, tag = 'input window, operand 0, single buffered']
    #allocation3 [shape = 's32[1]{0}', space=sflag, size = 0x4, scoped, tag = 'scoped memory for tpu_custom_call.1']
    #allocation4 [shape = 's32[1]{0}', space=sflag, size = 0x4, scoped, tag = 'scoped memory for tpu_custom_call.1']
    #allocation5 [shape = 'u8[8192]{0}', space=vmem, size = 0x2000, scoped, tag = 'input window, operand 1, single buffered']
    #allocation6 [shape = 's32[1]{0}', space=sflag, size = 0x4, scoped, tag = 'scoped memory for tpu_custom_call.1']
    #allocation7 [shape = 'u8[196608]{0}', space=vmem, size = 0x30000, scoped, tag = 'input window, operand 2, single buffered']
    #allocation8 [shape = 'u8[4096]{0}', space=vmem, size = 0x1000, scoped, tag = 'input window, operand 3, single buffered']
    #allocation9 [shape = 's32[1]{0}', space=sflag, size = 0x4, scoped, tag = 'scoped memory for tpu_custom_call.1']
    #allocation10 [shape = 'u8[4096]{0}', space=vmem, size = 0x1000, scoped, tag = 'output window, operand 0, single buffered']
    %9 = vsyncpa [#allocation3], 0
    %10 = vsyncpa [#allocation6], 0
    %11 = vsyncpa [#allocation9], 0
    %12 = vsyncpa [#allocation4], 0
    // Predicated region
    $region2: #{tpu_custom_call.1} parent=1 // pred_check
      _
    $region3: #{tpu_custom_call.1} parent=1 // pred_check_branch
      %14 = sbr.rel (0) target = $region5
    $region4: #{tpu_custom_call.1} parent=1 // pred_region
      %s16 = ssub.s32 128, 128
      %17 = vsyncadd [#allocation3], %s16
      %s19 = sshll.u32 [#allocation2], 4
      %s20 = int_to_ptr.vmem [resolvable:$true] %s19
      %22 = dma.hbm_to_vmem [thread:$0]  %s0, 128, %s20, [#allocation3]
    $region5: #{tpu_custom_call.1} parent=1 // pred_fallthru
      _
    // Predicated region
    $region6: #{tpu_custom_call.1} parent=1 // pred_check
      _
    $region7: #{tpu_custom_call.1} parent=1 // pred_check_branch
      %24 = sbr.rel (0) target = $region9
    $region8: #{tpu_custom_call.1} parent=1 // pred_region
      %s26 = ssub.s32 256, 256
      %27 = vsyncadd [#allocation6], %s26
      %s28 = sshll.u32 [#allocation5], 4
      %s29 = int_to_ptr.vmem [resolvable:$true] %s28
      %34 = dma.hbm_to_vmem [thread:$0]  %s1, 256, %s29, [#allocation6], 128, 128, 8
    $region9: #{tpu_custom_call.1} parent=1 // pred_fallthru
      _
    // Predicated region
    $region10: #{tpu_custom_call.1} parent=1 // pred_check
      _
    $region11: #{tpu_custom_call.1} parent=1 // pred_check_branch
      %36 = sbr.rel (0) target = $region13
    $region12: #{tpu_custom_call.1} parent=1 // pred_region
      %s38 = ssub.s32 6144, 6144
      %39 = vsyncadd [#allocation6], %s38
      %s40 = sshll.u32 [#allocation7], 4
      %s41 = int_to_ptr.vmem [resolvable:$true] %s40
      %46 = dma.hbm_to_vmem [thread:$0]  %s2, 6144, %s41, [#allocation6], 128, 128, 8
    $region13: #{tpu_custom_call.1} parent=1 // pred_fallthru
      _
    // Predicated region
    $region14: #{tpu_custom_call.1} parent=1 // pred_check
      _
    $region15: #{tpu_custom_call.1} parent=1 // pred_check_branch
      %48 = sbr.rel (0) target = $region17
    $region16: #{tpu_custom_call.1} parent=1 // pred_region
      %s50 = ssub.s32 128, 128
      %51 = vsyncadd [#allocation9], %s50
      %s53 = sshll.u32 [#allocation8], 4
      %s54 = int_to_ptr.vmem [resolvable:$true] %s53
      %56 = dma.hbm_to_vmem [thread:$0]  %s3, 128, %s54, [#allocation9]
    $region17: #{tpu_custom_call.1} parent=1 // pred_fallthru
      _
    // Predicated region
    $region18: #{tpu_custom_call.1} parent=1 // pred_check
      _
    $region19: #{tpu_custom_call.1} parent=1 // pred_check_branch
      %58 = sbr.rel (0) target = $region21
    $region20: #{tpu_custom_call.1} parent=1 // pred_region
      %59 = dma.done [#allocation3], 128
    $region21: #{tpu_custom_call.1} parent=1 // pred_fallthru
      _
    // Predicated region
    $region22: #{tpu_custom_call.1} parent=1 // pred_check
      _
    $region23: #{tpu_custom_call.1} parent=1 // pred_check_branch
      %61 = sbr.rel (0) target = $region25
    $region24: #{tpu_custom_call.1} parent=1 // pred_region
      %62 = dma.done [#allocation6], 256
    $region25: #{tpu_custom_call.1} parent=1 // pred_fallthru
      _
    // Predicated region
    $region26: #{tpu_custom_call.1} parent=1 // pred_check
      _
    $region27: #{tpu_custom_call.1} parent=1 // pred_check_branch
      %64 = sbr.rel (0) target = $region29
    $region28: #{tpu_custom_call.1} parent=1 // pred_region
      %65 = dma.done [#allocation6], 6144
    $region29: #{tpu_custom_call.1} parent=1 // pred_fallthru
      _
    // Predicated region
    $region30: #{tpu_custom_call.1} parent=1 // pred_check
      _
    $region31: #{tpu_custom_call.1} parent=1 // pred_check_branch
      %67 = sbr.rel (0) target = $region33
    $region32: #{tpu_custom_call.1} parent=1 // pred_region
      %68 = dma.done [#allocation9], 128
    $region33: #{tpu_custom_call.1} parent=1 // pred_fallthru
      _
    %v69 = vld [vmem:[#allocation2] sm:$0xff]
    %v70 = vld [vmem:[#allocation5] sm:$0xff]
    %v71 = vld [vmem:[#allocation5 + $0x8] sm:$0xff]
    %v72 = vld [vmem:[#allocation8] sm:$0x1]
    %v73 = vlaneseq
    %v74 = vshrl.u32 %v73, 7
    %v75 = vsub.s32 0, %v74
    %v76 = vrot.slane %v72, %v75
    %vm77 = vcmask 130048
    %v79 = vsel %vm77, %v69, 0
    %81 = vmatprep.subr.mxu0 0.0
    %82 = vmatpush1.msra.mxu0 0.0
    %83 = vmatprep.subr.mxu0 0.0
    %84 = vmatpush1.msra.mxu0 0.0
    %85 = vmatprep.subr.mxu0 0.0
    %86 = vmatpush1.msra.mxu0 0.0
    %87 = vmatprep.subr.mxu0 0.0
    %88 = vmatpush1.msra.mxu0 0.0
    %89 = vmatprep.subr.mxu0 0.0
    %90 = vmatpush1.msra.mxu0 0.0
    %91 = vmatprep.subr.mxu0 0.0
    %92 = vmatpush1.msra.mxu0 0.0
    %93 = vmatprep.subr.mxu0 0.0
    %94 = vmatpush1.msra.mxu0 0.0
    %95 = vmatprep.subr.mxu0 0.0
    %96 = vmatpush1.msra.mxu0 0.0
    %97 = vmatprep.subr.mxu0 0.0
    %98 = vmatpush1.msra.mxu0 0.0
    %99 = vmatprep.subr.mxu0 0.0
    %100 = vmatpush1.msra.mxu0 0.0
    %101 = vmatprep.subr.mxu0 0.0
    %102 = vmatpush1.msra.mxu0 0.0
    %103 = vmatprep.subr.mxu0 0.0
    %104 = vmatpush1.msra.mxu0 0.0
    %105 = vmatprep.subr.mxu0 0.0
    %106 = vmatpush1.msra.mxu0 0.0
    %107 = vmatprep.subr.mxu0 0.0
    %108 = vmatpush1.msra.mxu0 0.0
    %109 = vmatprep.subr.mxu0 0.0
    %110 = vmatpush1.msra.mxu0 %v71
    %111 = vmatprep.subr.mxu0 0.0
    %112 = vmatpush1.msra.mxu0 %v70
    %113 = vmatprep.subr.mxu0 0.0
    %114 = vmatpush2.msra.mxu0 0.0
    %115 = vmatprep.subr.mxu0 0.0
    %116 = vmatpush2.msra.mxu0 0.0
    %117 = vmatprep.subr.mxu0 0.0
    %118 = vmatpush2.msra.mxu0 0.0
    %119 = vmatprep.subr.mxu0 0.0
    %120 = vmatpush2.msra.mxu0 0.0
    %121 = vmatprep.subr.mxu0 0.0
    %122 = vmatpush2.msra.mxu0 0.0
    %123 = vmatprep.subr.mxu0 0.0
    %124 = vmatpush2.msra.mxu0 0.0
    %125 = vmatprep.subr.mxu0 0.0
    %126 = vmatpush2.msra.mxu0 0.0
    %127 = vmatprep.subr.mxu0 0.0
    %128 = vmatpush2.msra.mxu0 0.0
    %129 = vmatprep.subr.mxu0 0.0
    %130 = vmatpush2.msra.mxu0 0.0
    %131 = vmatprep.subr.mxu0 0.0
    %132 = vmatpush2.msra.mxu0 0.0
    %133 = vmatprep.subr.mxu0 0.0
    %134 = vmatpush2.msra.mxu0 0.0
    %135 = vmatprep.subr.mxu0 0.0
    %136 = vmatpush2.msra.mxu0 0.0
    %137 = vmatprep.subr.mxu0 0.0
    %138 = vmatpush2.msra.mxu0 0.0
    %139 = vmatprep.subr.mxu0 0.0
    %140 = vmatpush2.msra.mxu0 0.0
    %141 = vmatprep.subr.mxu0 0.0
    %142 = vmatpush2.msra.mxu0 0.0
    %143 = vmatprep.subr.mxu0 0.0
    %144 = vmatpush2.msra.mxu0 0.0
    %145 = vmatprep.mubr.f32.mxu0 0.0
    %146 = vmatmul.mubr.f32.gmra.mxu0 %v79
    %v147 = vpop.f32.mrf.mxu0
    %v148 = vadd.f32 %v76, %v147
    %v149 = vpop.f32.mrf.mxu0
    %150 = vdwg.mxu0
    %v151 = vmax.f32 %v148, 0.0
    %v152 = vld [vmem:[#allocation7] sm:$0xff]
    %v153 = vld [vmem:[#allocation7 + $0x8] sm:$0xff]
    %v154 = vld [vmem:[#allocation7 + $0x10] sm:$0xff]
    %v155 = vld [vmem:[#allocation7 + $0x18] sm:$0xff]
    %v156 = vld [vmem:[#allocation7 + $0x20] sm:$0xff]
    %v157 = vld [vmem:[#allocation7 + $0x28] sm:$0xff]
    %v158 = vld [vmem:[#allocation7 + $0x30] sm:$0xff]
    %v159 = vld [vmem:[#allocation7 + $0x38] sm:$0xff]
    %v160 = vld [vmem:[#allocation7 + $0x40] sm:$0xff]
    %v161 = vld [vmem:[#allocation7 + $0x48] sm:$0xff]
    %v162 = vld [vmem:[#allocation7 + $0x50] sm:$0xff]
    %v163 = vld [vmem:[#allocation7 + $0x58] sm:$0xff]
    %v164 = vld [vmem:[#allocation7 + $0x60] sm:$0xff]
    %v165 = vld [vmem:[#allocation7 + $0x68] sm:$0xff]
    %v166 = vld [vmem:[#allocation7 + $0x70] sm:$0xff]
    %v167 = vld [vmem:[#allocation7 + $0x78] sm:$0xff]
    %v168 = vld [vmem:[#allocation8 + $0x1] sm:$0x1]
    %v169 = vlaneseq
    %v170 = vshrl.u32 %v169, 7
    %v171 = vsub.s32 0, %v170
    %v172 = vrot.slane %v168, %v171
    %173 = vmatprep.subr.mxu0 0.0
    %174 = vmatpush1.msra.mxu0 %v167
    %175 = vmatprep.subr.mxu0 0.0
    %176 = vmatpush1.msra.mxu0 %v166
    %177 = vmatprep.subr.mxu0 0.0
    %178 = vmatpush1.msra.mxu0 %v165
    %179 = vmatprep.subr.mxu0 0.0
    %180 = vmatpush1.msra.mxu0 %v164
    %181 = vmatprep.subr.mxu0 0.0
    %182 = vmatpush1.msra.mxu0 %v163
    %183 = vmatprep.subr.mxu0 0.0
    %184 = vmatpush1.msra.mxu0 %v162
    %185 = vmatprep.subr.mxu0 0.0
    %186 = vmatpush1.msra.mxu0 %v161
    %187 = vmatprep.subr.mxu0 0.0
    %188 = vmatpush1.msra.mxu0 %v160
    %189 = vmatprep.subr.mxu0 0.0
    %190 = vmatpush1.msra.mxu0 %v159
    %191 = vmatprep.subr.mxu0 0.0
    %192 = vmatpush1.msra.mxu0 %v158
    %193 = vmatprep.subr.mxu0 0.0
    %194 = vmatpush1.msra.mxu0 %v157
    %195 = vmatprep.subr.mxu0 0.0
    %196 = vmatpush1.msra.mxu0 %v156
    %197 = vmatprep.subr.mxu0 0.0
    %198 = vmatpush1.msra.mxu0 %v155
    %199 = vmatprep.subr.mxu0 0.0
    %200 = vmatpush1.msra.mxu0 %v154
    %201 = vmatprep.subr.mxu0 0.0
    %202 = vmatpush1.msra.mxu0 %v153
    %203 = vmatprep.subr.mxu0 0.0
    %204 = vmatpush1.msra.mxu0 %v152
    %205 = vmatprep.subr.mxu0 0.0
    %206 = vmatpush2.msra.mxu0 0.0
    %207 = vmatprep.subr.mxu0 0.0
    %208 = vmatpush2.msra.mxu0 0.0
    %209 = vmatprep.subr.mxu0 0.0
    %210 = vmatpush2.msra.mxu0 0.0
    %211 = vmatprep.subr.mxu0 0.0
    %212 = vmatpush2.msra.mxu0 0.0
    %213 = vmatprep.subr.mxu0 0.0
    %214 = vmatpush2.msra.mxu0 0.0
    %215 = vmatprep.subr.mxu0 0.0
    %216 = vmatpush2.msra.mxu0 0.0
    %217 = vmatprep.subr.mxu0 0.0
    %218 = vmatpush2.msra.mxu0 0.0
    %219 = vmatprep.subr.mxu0 0.0
    %220 = vmatpush2.msra.mxu0 0.0
    %221 = vmatprep.subr.mxu0 0.0
    %222 = vmatpush2.msra.mxu0 0.0
    %223 = vmatprep.subr.mxu0 0.0
    %224 = vmatpush2.msra.mxu0 0.0
    %225 = vmatprep.subr.mxu0 0.0
    %226 = vmatpush2.msra.mxu0 0.0
    %227 = vmatprep.subr.mxu0 0.0
    %228 = vmatpush2.msra.mxu0 0.0
    %229 = vmatprep.subr.mxu0 0.0
    %230 = vmatpush2.msra.mxu0 0.0
    %231 = vmatprep.subr.mxu0 0.0
    %232 = vmatpush2.msra.mxu0 0.0
    %233 = vmatprep.subr.mxu0 0.0
    %234 = vmatpush2.msra.mxu0 0.0
    %235 = vmatprep.subr.mxu0 0.0
    %236 = vmatpush2.msra.mxu0 0.0
    %237 = vmatprep.mubr.f32.mxu0 0.0
    %238 = vmatmul.mubr.f32.gmra.mxu0 %v151
    %v239 = vpop.f32.mrf.mxu0
    %v240 = vadd.f32 %v172, %v239
    %v241 = vpop.f32.mrf.mxu0
    %242 = vdwg.mxu0
    %v243 = vmax.f32 %v240, 0.0
    %s244 = scalar_lea.vmem [#allocation7], 128
    %v245 = vld [vmem:[%s244] sm:$0xff]
    %v246 = vld [vmem:[%s244 + $0x8] sm:$0xff]
    %v247 = vld [vmem:[%s244 + $0x10] sm:$0xff]
    %v248 = vld [vmem:[%s244 + $0x18] sm:$0xff]
    %v249 = vld [vmem:[%s244 + $0x20] sm:$0xff]
    %v250 = vld [vmem:[%s244 + $0x28] sm:$0xff]
    %v251 = vld [vmem:[%s244 + $0x30] sm:$0xff]
    %v252 = vld [vmem:[%s244 + $0x38] sm:$0xff]
    %v253 = vld [vmem:[%s244 + $0x40] sm:$0xff]
    %v254 = vld [vmem:[%s244 + $0x48] sm:$0xff]
    %v255 = vld [vmem:[%s244 + $0x50] sm:$0xff]
    %v256 = vld [vmem:[%s244 + $0x58] sm:$0xff]
    %v257 = vld [vmem:[%s244 + $0x60] sm:$0xff]
    %v258 = vld [vmem:[%s244 + $0x68] sm:$0xff]
    %v259 = vld [vmem:[%s244 + $0x70] sm:$0xff]
    %v260 = vld [vmem:[%s244 + $0x78] sm:$0xff]
    %v261 = vld [vmem:[#allocation8 + $0x2] sm:$0x1]
    %v262 = vlaneseq
    %v263 = vshrl.u32 %v262, 7
    %v264 = vsub.s32 0, %v263
    %v265 = vrot.slane %v261, %v264
    %266 = vmatprep.subr.mxu0 0.0
    %267 = vmatpush1.msra.mxu0 %v260
    %268 = vmatprep.subr.mxu0 0.0
    %269 = vmatpush1.msra.mxu0 %v259
    %270 = vmatprep.subr.mxu0 0.0
    %271 = vmatpush1.msra.mxu0 %v258
    %272 = vmatprep.subr.mxu0 0.0
    %273 = vmatpush1.msra.mxu0 %v257
    %274 = vmatprep.subr.mxu0 0.0
    %275 = vmatpush1.msra.mxu0 %v256
    %276 = vmatprep.subr.mxu0 0.0
    %277 = vmatpush1.msra.mxu0 %v255
    %278 = vmatprep.subr.mxu0 0.0
    %279 = vmatpush1.msra.mxu0 %v254
    %280 = vmatprep.subr.mxu0 0.0
    %281 = vmatpush1.msra.mxu0 %v253
    %282 = vmatprep.subr.mxu0 0.0
    %283 = vmatpush1.msra.mxu0 %v252
    %284 = vmatprep.subr.mxu0 0.0
    %285 = vmatpush1.msra.mxu0 %v251
    %286 = vmatprep.subr.mxu0 0.0
    %287 = vmatpush1.msra.mxu0 %v250
    %288 = vmatprep.subr.mxu0 0.0
    %289 = vmatpush1.msra.mxu0 %v249
    %290 = vmatprep.subr.mxu0 0.0
    %291 = vmatpush1.msra.mxu0 %v248
    %292 = vmatprep.subr.mxu0 0.0
    %293 = vmatpush1.msra.mxu0 %v247
    %294 = vmatprep.subr.mxu0 0.0
    %295 = vmatpush1.msra.mxu0 %v246
    %296 = vmatprep.subr.mxu0 0.0
    %297 = vmatpush1.msra.mxu0 %v245
    %298 = vmatprep.subr.mxu0 0.0
    %299 = vmatpush2.msra.mxu0 0.0
    %300 = vmatprep.subr.mxu0 0.0
    %301 = vmatpush2.msra.mxu0 0.0
    %302 = vmatprep.subr.mxu0 0.0
    %303 = vmatpush2.msra.mxu0 0.0
    %304 = vmatprep.subr.mxu0 0.0
    %305 = vmatpush2.msra.mxu0 0.0
    %306 = vmatprep.subr.mxu0 0.0
    %307 = vmatpush2.msra.mxu0 0.0
    %308 = vmatprep.subr.mxu0 0.0
    %309 = vmatpush2.msra.mxu0 0.0
    %310 = vmatprep.subr.mxu0 0.0
    %311 = vmatpush2.msra.mxu0 0.0
    %312 = vmatprep.subr.mxu0 0.0
    %313 = vmatpush2.msra.mxu0 0.0
    %314 = vmatprep.subr.mxu0 0.0
    %315 = vmatpush2.msra.mxu0 0.0
    %316 = vmatprep.subr.mxu0 0.0
    %317 = vmatpush2.msra.mxu0 0.0
    %318 = vmatprep.subr.mxu0 0.0
    %319 = vmatpush2.msra.mxu0 0.0
    %320 = vmatprep.subr.mxu0 0.0
    %321 = vmatpush2.msra.mxu0 0.0
    %322 = vmatprep.subr.mxu0 0.0
    %323 = vmatpush2.msra.mxu0 0.0
    %324 = vmatprep.subr.mxu0 0.0
    %325 = vmatpush2.msra.mxu0 0.0
    %326 = vmatprep.subr.mxu0 0.0
    %327 = vmatpush2.msra.mxu0 0.0
    %328 = vmatprep.subr.mxu0 0.0
    %329 = vmatpush2.msra.mxu0 0.0
    %330 = vmatprep.mubr.f32.mxu0 0.0
    %331 = vmatmul.mubr.f32.gmra.mxu0 %v243
    %v332 = vpop.f32.mrf.mxu0
    %v333 = vadd.f32 %v265, %v332
    %v334 = vpop.f32.mrf.mxu0
    %335 = vdwg.mxu0
    %v336 = vmax.f32 %v333, 0.0
    %s337 = scalar_lea.vmem [#allocation7], 256
    %v338 = vld [vmem:[%s337] sm:$0xff]
    %v339 = vld [vmem:[%s337 + $0x8] sm:$0xff]
    %v340 = vld [vmem:[%s337 + $0x10] sm:$0xff]
    %v341 = vld [vmem:[%s337 + $0x18] sm:$0xff]
    %v342 = vld [vmem:[%s337 + $0x20] sm:$0xff]
    %v343 = vld [vmem:[%s337 + $0x28] sm:$0xff]
    %v344 = vld [vmem:[%s337 + $0x30] sm:$0xff]
    %v345 = vld [vmem:[%s337 + $0x38] sm:$0xff]
    %v346 = vld [vmem:[%s337 + $0x40] sm:$0xff]
    %v347 = vld [vmem:[%s337 + $0x48] sm:$0xff]
    %v348 = vld [vmem:[%s337 + $0x50] sm:$0xff]
    %v349 = vld [vmem:[%s337 + $0x58] sm:$0xff]
    %v350 = vld [vmem:[%s337 + $0x60] sm:$0xff]
    %v351 = vld [vmem:[%s337 + $0x68] sm:$0xff]
    %v352 = vld [vmem:[%s337 + $0x70] sm:$0xff]
    %v353 = vld [vmem:[%s337 + $0x78] sm:$0xff]
    %v354 = vld [vmem:[#allocation8 + $0x3] sm:$0x1]
    %v355 = vlaneseq
    %v356 = vshrl.u32 %v355, 7
    %v357 = vsub.s32 0, %v356
    %v358 = vrot.slane %v354, %v357
    %359 = vmatprep.subr.mxu0 0.0
    %360 = vmatpush1.msra.mxu0 %v353
    %361 = vmatprep.subr.mxu0 0.0
    %362 = vmatpush1.msra.mxu0 %v352
    %363 = vmatprep.subr.mxu0 0.0
    %364 = vmatpush1.msra.mxu0 %v351
    %365 = vmatprep.subr.mxu0 0.0
    %366 = vmatpush1.msra.mxu0 %v350
    %367 = vmatprep.subr.mxu0 0.0
    %368 = vmatpush1.msra.mxu0 %v349
    %369 = vmatprep.subr.mxu0 0.0
    %370 = vmatpush1.msra.mxu0 %v348
    %371 = vmatprep.subr.mxu0 0.0
    %372 = vmatpush1.msra.mxu0 %v347
    %373 = vmatprep.subr.mxu0 0.0
    %374 = vmatpush1.msra.mxu0 %v346
    %375 = vmatprep.subr.mxu0 0.0
    %376 = vmatpush1.msra.mxu0 %v345
    %377 = vmatprep.subr.mxu0 0.0
    %378 = vmatpush1.msra.mxu0 %v344
    %379 = vmatprep.subr.mxu0 0.0
    %380 = vmatpush1.msra.mxu0 %v343
    %381 = vmatprep.subr.mxu0 0.0
    %382 = vmatpush1.msra.mxu0 %v342
    %383 = vmatprep.subr.mxu0 0.0
    %384 = vmatpush1.msra.mxu0 %v341
    %385 = vmatprep.subr.mxu0 0.0
    %386 = vmatpush1.msra.mxu0 %v340
    %387 = vmatprep.subr.mxu0 0.0
    %388 = vmatpush1.msra.mxu0 %v339
    %389 = vmatprep.subr.mxu0 0.0
    %390 = vmatpush1.msra.mxu0 %v338
    %391 = vmatprep.subr.mxu0 0.0
    %392 = vmatpush2.msra.mxu0 0.0
    %393 = vmatprep.subr.mxu0 0.0
    %394 = vmatpush2.msra.mxu0 0.0
    %395 = vmatprep.subr.mxu0 0.0
    %396 = vmatpush2.msra.mxu0 0.0
    %397 = vmatprep.subr.mxu0 0.0
    %398 = vmatpush2.msra.mxu0 0.0
    %399 = vmatprep.subr.mxu0 0.0
    %400 = vmatpush2.msra.mxu0 0.0
    %401 = vmatprep.subr.mxu0 0.0
    %402 = vmatpush2.msra.mxu0 0.0
    %403 = vmatprep.subr.mxu0 0.0
    %404 = vmatpush2.msra.mxu0 0.0
    %405 = vmatprep.subr.mxu0 0.0
    %406 = vmatpush2.msra.mxu0 0.0
    %407 = vmatprep.subr.mxu0 0.0
    %408 = vmatpush2.msra.mxu0 0.0
    %409 = vmatprep.subr.mxu0 0.0
    %410 = vmatpush2.msra.mxu0 0.0
    %411 = vmatprep.subr.mxu0 0.0
    %412 = vmatpush2.msra.mxu0 0.0
    %413 = vmatprep.subr.mxu0 0.0
    %414 = vmatpush2.msra.mxu0 0.0
    %415 = vmatprep.subr.mxu0 0.0
    %416 = vmatpush2.msra.mxu0 0.0
    %417 = vmatprep.subr.mxu0 0.0
    %418 = vmatpush2.msra.mxu0 0.0
    %419 = vmatprep.subr.mxu0 0.0
    %420 = vmatpush2.msra.mxu0 0.0
    %421 = vmatprep.subr.mxu0 0.0
    %422 = vmatpush2.msra.mxu0 0.0
    %423 = vmatprep.mubr.f32.mxu0 0.0
    %424 = vmatmul.mubr.f32.gmra.mxu0 %v336
    %v425 = vpop.f32.mrf.mxu0
    %v426 = vadd.f32 %v358, %v425
    %v427 = vpop.f32.mrf.mxu0
    %428 = vdwg.mxu0
    %vm429 = vcmask 31744
    %v430 = vsel %vm429, %v426, 0.0
    %431 = vadd.xlane.f32.xlu0 %v430
    %v432 = vpop.xlane.xlu0 %431
    %434 = vset.pattern.permute.xlu0 4
    %435 = vperm.xlu0 %434, %v426
    %v436 = vpop.permute.xlu0 %435
    %v438 = vadd.f32 %v436, %v426
    %v439 = vmul.f32 %v432, 0.25
    %v440 = vsub.f32 %v438, %v439
    %441 = vst [vmem:[#allocation10] sm:$0xff] %v440
    // Predicated region
    $region34: #{tpu_custom_call.1} parent=1 // pred_check
      _
    $region35: #{tpu_custom_call.1} parent=1 // pred_check_branch
      %443 = sbr.rel (0) target = $region37
    $region36: #{tpu_custom_call.1} parent=1 // pred_region
      %s445 = ssub.s32 128, 128
      %446 = vsyncadd [#allocation4], %s445
      %s448 = sshll.u32 [#allocation10], 4
      %s449 = int_to_ptr.vmem [resolvable:$true] %s448
      %451 = dma.vmem_to_hbm [thread:$0]  %s449, 128, %s4, [#allocation4]
    $region37: #{tpu_custom_call.1} parent=1 // pred_fallthru
      _
    // Predicated region
    $region38: #{tpu_custom_call.1} parent=1 // pred_check
      _
    $region39: #{tpu_custom_call.1} parent=1 // pred_check_branch
      %453 = sbr.rel (0) target = $region41
    $region40: #{tpu_custom_call.1} parent=1 // pred_region
      %454 = dma.done [#allocation4], 128
    $region41: #{tpu_custom_call.1} parent=1 // pred_fallthru
      _
    %455 = vsyncpa [#allocation3], 1
    %456 = vsyncpa [#allocation6], 1
    %457 = vsyncpa [#allocation9], 1
    %458 = vsyncpa [#allocation4], 1

</llo_original>
